<compile_context>
chip_gen: v7x
topology: tpu7x:2x2x1
jax: 0.10.0
libtpu: 0.0.40
codegen_flags: <defaults>
</compile_context>

<pallas_src>
import functools
import math

import jax
import jax.numpy as jnp
from jax import lax
from jax.experimental import pallas as pl
from jax.experimental.pallas import tpu as pltpu

_LANES = 128
_SUBLANES = 8
_MAX_BLOCK_ROWS = 4096   # 4096 x 128 x 4B = 2 MiB per f32 input tile
_CHUNK_ROWS = 512        # in-kernel fold chunk (bounds vreg/VMEM live ranges)


def _round_up(x: int, m: int) -> int:
    return (x + m - 1) // m * m


def _sublane_multiple(dtype) -> int:
    # f32 -> 8, bf16/f16 -> 16, int8/uint8 -> 32 (sublane packing of narrow dtypes).
    return max(_SUBLANES, 32 // max(1, jnp.dtype(dtype).itemsize))


def _num_tensorcores() -> int:
    """Best-effort TensorCore count (2 on v7x-style parts, 1 on v5e/v6e)."""
    try:
        info = pltpu.get_tpu_info()
    except Exception:
        return 2
    for attr in ("num_cores", "core_count", "num_tensorcores",
                 "tensor_core_count", "cores_per_chip"):
        v = getattr(info, attr, None)
        if isinstance(v, int) and v >= 1:
            return v
    return 2


def _masked_mse_kernel(pred_ref, tgt_ref, msk_ref,
                       loss_sum_ref, mask_sum_ref,
                       *, block_rows: int, chunk_rows: int,
                       n_inner: int, valid_rows: int):
    o_idx = pl.program_id(0)
    i_idx = pl.program_id(1)

    @pl.when(i_idx == 0)
    def _init():
        loss_sum_ref[...] = jnp.zeros_like(loss_sum_ref)
        mask_sum_ref[...] = jnp.zeros_like(mask_sum_ref)

    blk = o_idx * n_inner + i_idx
    n_chunks = block_rows // chunk_rows
    zeros = jnp.zeros((_SUBLANES, _LANES), jnp.float32)

    def load_chunk(c):
        off = pl.multiple_of(c * chunk_rows, chunk_rows)
        sl = pl.ds(off, chunk_rows)
        p = pred_ref[sl, :].astype(jnp.float32)
        t = tgt_ref[sl, :].astype(jnp.float32)
        m = msk_ref[sl, :].astype(jnp.float32)
        return p, t, m

    def fold(x):
        # (chunk_rows, 128) -> (8, 128) with pure elementwise vreg adds (VPU only).
        return x.reshape(-1, _SUBLANES, _LANES).sum(axis=0)

    # A block is "clean" iff every one of its rows is inside the valid range.  The
    # clamped duplicate block (blk > last real block) is never clean and its rows
    # are all >= valid_rows, so it contributes exactly zero in the edge path.
    is_clean = (blk + 1) * block_rows <= valid_rows

    @pl.when(is_clean)
    def _fast_path():
        def body(c, carry):
            ls, ms = carry
            p, t, m = load_chunk(c)
            d = p - t
            return ls + fold(d * d * m), ms + fold(m)

        ls, ms = lax.fori_loop(0, n_chunks, body, (zeros, zeros), unroll=True)
        loss_sum_ref[...] += ls
        mask_sum_ref[...] += ms

    @pl.when(jnp.logical_not(is_clean))
    def _edge_path():
        base = blk * block_rows

        def body(c, carry):
            ls, ms = carry
            p, t, m = load_chunk(c)
            row_ids = base + c * chunk_rows + lax.broadcasted_iota(
                jnp.int32, (chunk_rows, _LANES), 0)
            valid = row_ids < valid_rows
            d = p - t
            ml = jnp.where(valid, d * d * m, 0.0)
            mm = jnp.where(valid, m, 0.0)
            return ls + fold(ml), ms + fold(mm)

        ls, ms = lax.fori_loop(0, n_chunks, body, (zeros, zeros), unroll=True)
        loss_sum_ref[...] += ls
        mask_sum_ref[...] += ms


def _canon(x: jnp.ndarray) -> jnp.ndarray:
    # bool arrays have awkward TPU packing; promote to int8 (still 1 byte of HBM traffic).
    return x.astype(jnp.int8) if x.dtype == jnp.bool_ else x


def masked_mse_loss(outputs: jnp.ndarray,
                    target: jnp.ndarray,
                    mask: jnp.ndarray) -> jnp.ndarray:
    """Pallas TPU implementation of MaskedLoss(nn.MSELoss(reduction='none'))."""
    # TODO(synk): only the MSELoss(reduction='none') loss_fn case of MaskedLoss is
    # implemented; other elementwise loss_fn modules need their own in-kernel expression.
    outputs, target, mask = _canon(outputs), _canon(target), _canon(mask)

    n = math.prod(outputs.shape)
    n_main = (n // _LANES) * _LANES
    n_tail = n - n_main

    flat_o = outputs.reshape(-1)
    flat_t = target.reshape(-1)
    flat_m = mask.reshape(-1)

    # <=127-element tail handled in plain JAX (avoids any host-side pad/copy of the
    # full arrays for non-128-aligned shapes).
    if n_tail:
        to = flat_o[n_main:].astype(jnp.float32)
        tt = flat_t[n_main:].astype(jnp.float32)
        tm = flat_m[n_main:].astype(jnp.float32)
        tail_loss = jnp.sum((to - tt) ** 2 * tm)
        tail_mask = jnp.sum(tm)
    else:
        tail_loss = jnp.float32(0.0)
        tail_mask = jnp.float32(0.0)

    if n_main == 0:
        # Tiny input (< 128 elements): nothing for the kernel to do.
        return tail_loss / tail_mask

    def to2d(flat):
        main = flat if n_tail == 0 else flat[:n_main]   # free reshape when aligned
        return main.reshape(-1, _LANES)

    pred2d, tgt2d, msk2d = to2d(flat_o), to2d(flat_t), to2d(flat_m)

    rows = n_main // _LANES
    sub_mult = max(_sublane_multiple(a.dtype) for a in (pred2d, tgt2d, msk2d))
    block_rows = min(_MAX_BLOCK_ROWS, _round_up(rows, sub_mult))
    chunk_rows = _CHUNK_ROWS if (block_rows % _CHUNK_ROWS == 0
                                 and block_rows > _CHUNK_ROWS) else block_rows

    total_blocks = pl.cdiv(rows, block_rows)
    n_outer = 2 if (_num_tensorcores() >= 2 and total_blocks >= 2) else 1
    n_inner = pl.cdiv(total_blocks, n_outer)
    last_block = total_blocks - 1

    def in_map(o, i):
        # Clamp so the DMA window always stays inside the array; the clamped
        # duplicate block contributes nothing thanks to the in-kernel validity mask.
        return (jnp.minimum(o * n_inner + i, last_block), 0)

    in_spec = pl.BlockSpec((block_rows, _LANES), in_map)
    out_spec = pl.BlockSpec((None, _SUBLANES, _LANES), lambda o, i: (o, 0, 0))

    kernel = functools.partial(
        _masked_mse_kernel,
        block_rows=block_rows, chunk_rows=chunk_rows,
        n_inner=n_inner, valid_rows=rows)

    bytes_accessed = int(pred2d.size * pred2d.dtype.itemsize
                         + tgt2d.size * tgt2d.dtype.itemsize
                         + msk2d.size * msk2d.dtype.itemsize)

    loss_part, mask_part = pl.pallas_call(
        kernel,
        out_shape=(
            jax.ShapeDtypeStruct((n_outer, _SUBLANES, _LANES), jnp.float32),
            jax.ShapeDtypeStruct((n_outer, _SUBLANES, _LANES), jnp.float32),
        ),
        grid_spec=pltpu.PrefetchScalarGridSpec(
            num_scalar_prefetch=0,
            grid=(n_outer, n_inner),
            in_specs=[in_spec, in_spec, in_spec],
            out_specs=[out_spec, out_spec],
        ),
        compiler_params=pltpu.CompilerParams(
            dimension_semantics=("parallel", "arbitrary"),
            vmem_limit_bytes=32 << 20),
        cost_estimate=pl.CostEstimate(
            flops=6 * n, transcendentals=0, bytes_accessed=bytes_accessed),
    )(pred2d, tgt2d, msk2d)

    # Tiny final cross-lane reduction + division done in JAX.
    loss_total = jnp.sum(loss_part) + tail_loss
    mask_total = jnp.sum(mask_part) + tail_mask
    return loss_total / mask_total


def _reference(outputs, target, mask):
    o = outputs.astype(jnp.float32)
    t = target.astype(jnp.float32)
    m = mask.astype(jnp.float32)
    return jnp.sum(((o - t) ** 2) * m) / jnp.sum(m)


if __name__ == "__main__":
    key = jax.random.PRNGKey(0)
    k1, k2, k3, k4, k5, k6 = jax.random.split(key, 6)

    loss_fn = jax.jit(masked_mse_loss)

    # Small NCHW example consistent with a dense-prediction MaskedLoss call.
    shape = (2, 4, 16, 16)
    outputs = jax.random.normal(k1, shape, dtype=jnp.float32)
    target = jax.random.normal(k2, shape, dtype=jnp.float32)
    mask = (jax.random.uniform(k3, shape) > 0.3).astype(jnp.float32)

    result = jax.block_until_ready(loss_fn(outputs, target, mask))
    ref = _reference(outputs, target, mask)
    assert jnp.allclose(result, ref, rtol=1e-5, atol=1e-5), (result, ref)

    # Secondary check: exercises the non-128-aligned plain-JAX tail, the ragged
    # last-block masking (edge path), and the single-block code path.
    shape2 = (2, 4, 130, 129)  # 134160 elements -> 1048 full rows + 16-element tail
    outputs2 = jax.random.normal(k4, shape2, dtype=jnp.float32)
    target2 = jax.random.normal(k5, shape2, dtype=jnp.float32)
    mask2 = (jax.random.uniform(k6, shape2) > 0.3).astype(jnp.float32)

    result2 = jax.block_until_ready(loss_fn(outputs2, target2, mask2))
    ref2 = _reference(outputs2, target2, mask2)
    assert jnp.allclose(result2, ref2, rtol=1e-4, atol=1e-5), (result2, ref2)

    print("KERNEL_OK")
</pallas_src>

<mosaic_0001>
module attributes {stable_mosaic.version = 11 : i64} {
  func.func @_masked_mse_kernel(%arg0: i32, %arg1: i32, %arg2: memref<16x128xf32, #tpu.memory_space<vmem>>, %arg3: memref<16x128xf32, #tpu.memory_space<vmem>>, %arg4: memref<16x128xf32, #tpu.memory_space<vmem>>, %arg5: memref<1x8x128xf32, #tpu.memory_space<vmem>>, %arg6: memref<1x8x128xf32, #tpu.memory_space<vmem>>) attributes {dimension_semantics = [#tpu.dimension_semantics<parallel>, #tpu.dimension_semantics<arbitrary>], iteration_bounds = array<i64: 1, 1>, scalar_prefetch = 0 : i64, scratch_operands = 0 : i64, tpu.core_type = #tpu.core_type<tc>, window_params = [{transform_indices = @transform_0, window_bounds = array<i64: 16, 128>}, {transform_indices = @transform_1, window_bounds = array<i64: 16, 128>}, {transform_indices = @transform_2, window_bounds = array<i64: 16, 128>}, {transform_indices = @transform_3, window_bounds = array<i64: 1, 8, 128>}, {transform_indices = @transform_4, window_bounds = array<i64: 1, 8, 128>}]} {
    %c0_i32 = arith.constant 0 : i32
    %0 = arith.cmpi eq, %arg1, %c0_i32 : i32
    %1 = arith.extui %0 : i1 to i32
    %c0_i32_0 = arith.constant 0 : i32
    %2 = arith.cmpi ne, %1, %c0_i32_0 : i32
    scf.if %2 {
      %cst_5 = arith.constant 0.000000e+00 : f32
      %14 = vector.broadcast %cst_5 : f32 to vector<8x128xf32>
      %c0 = arith.constant 0 : index
      %c0_6 = arith.constant 0 : index
      %c0_7 = arith.constant 0 : index
      %15 = vector.load %arg5[%c0, %c0_6, %c0_7] : memref<1x8x128xf32, #tpu.memory_space<vmem>>, vector<1x8x128xf32>
      %16 = vector.shape_cast %15 : vector<1x8x128xf32> to vector<8x128xf32>
      %17 = vector.shape_cast %14 : vector<8x128xf32> to vector<1x8x128xf32>
      tpu.vector_store %arg5[%c0, %c0_6, %c0_7], %17 {strides = array<i32>} : memref<1x8x128xf32, #tpu.memory_space<vmem>>, vector<1x8x128xf32>,
      %cst_8 = arith.constant 0.000000e+00 : f32
      %18 = vector.broadcast %cst_8 : f32 to vector<8x128xf32>
      %c0_9 = arith.constant 0 : index
      %c0_10 = arith.constant 0 : index
      %c0_11 = arith.constant 0 : index
      %19 = vector.load %arg6[%c0_9, %c0_10, %c0_11] : memref<1x8x128xf32, #tpu.memory_space<vmem>>, vector<1x8x128xf32>
      %20 = vector.shape_cast %19 : vector<1x8x128xf32> to vector<8x128xf32>
      %21 = vector.shape_cast %18 : vector<8x128xf32> to vector<1x8x128xf32>
      tpu.vector_store %arg6[%c0_9, %c0_10, %c0_11], %21 {strides = array<i32>} : memref<1x8x128xf32, #tpu.memory_space<vmem>>, vector<1x8x128xf32>,
    } else {
    }
    %c1_i32 = arith.constant 1 : i32
    %3 = arith.muli %arg0, %c1_i32 : i32
    %4 = arith.addi %3, %arg1 : i32
    %cst = arith.constant 0.000000e+00 : f32
    %5 = vector.broadcast %cst : f32 to vector<8x128xf32>
    %c1_i32_1 = arith.constant 1 : i32
    %6 = arith.addi %4, %c1_i32_1 : i32
    %c16_i32 = arith.constant 16 : i32
    %7 = arith.muli %6, %c16_i32 : i32
    %c16_i32_2 = arith.constant 16 : i32
    %8 = arith.cmpi sle, %7, %c16_i32_2 : i32
    %9 = arith.extui %8 : i1 to i32
    %c0_i32_3 = arith.constant 0 : i32
    %10 = arith.cmpi ne, %9, %c0_i32_3 : i32
    scf.if %10 {
      %c0_i32_5 = arith.constant 0 : i32
      %c16_i32_6 = arith.constant 16 : i32
      %14 = arith.muli %c0_i32_5, %c16_i32_6 : i32
      %15 = tpu.assume_multiple %14, 16 : i32
      %16 = arith.index_cast %15 : i32 to index
      %c0 = arith.constant 0 : index
      %17 = vector.load %arg2[%16, %c0] : memref<16x128xf32, #tpu.memory_space<vmem>>, vector<16x128xf32>
      %18 = arith.index_cast %15 : i32 to index
      %c0_7 = arith.constant 0 : index
      %19 = vector.load %arg3[%18, %c0_7] : memref<16x128xf32, #tpu.memory_space<vmem>>, vector<16x128xf32>
      %20 = arith.index_cast %15 : i32 to index
      %c0_8 = arith.constant 0 : index
      %21 = vector.load %arg4[%20, %c0_8] : memref<16x128xf32, #tpu.memory_space<vmem>>, vector<16x128xf32>
      %22 = arith.subf %17, %19 : vector<16x128xf32>
      %23 = arith.mulf %22, %22 : vector<16x128xf32>
      %24 = arith.mulf %23, %21 : vector<16x128xf32>
      %25 = vector.shape_cast %24 : vector<16x128xf32> to vector<2x8x128xf32>
      %cst_9 = arith.constant dense<0.000000e+00> : vector<8x128xf32>
      %26 = vector.multi_reduction <add>, %25, %cst_9 [0] : vector<2x8x128xf32> to vector<8x128xf32>
      %27 = arith.addf %5, %26 : vector<8x128xf32>
      %28 = vector.shape_cast %21 : vector<16x128xf32> to vector<2x8x128xf32>
      %cst_10 = arith.constant dense<0.000000e+00> : vector<8x128xf32>
      %29 = vector.multi_reduction <add>, %28, %cst_10 [0] : vector<2x8x128xf32> to vector<8x128xf32>
      %30 = arith.addf %5, %29 : vector<8x128xf32>
      %c1_i32_11 = arith.constant 1 : i32
      %c0_12 = arith.constant 0 : index
      %c0_13 = arith.constant 0 : index
      %c0_14 = arith.constant 0 : index
      %31 = vector.load %arg5[%c0_12, %c0_13, %c0_14] : memref<1x8x128xf32, #tpu.memory_space<vmem>>, vector<1x8x128xf32>
      %32 = vector.shape_cast %31 : vector<1x8x128xf32> to vector<8x128xf32>
      %33 = arith.addf %32, %27 : vector<8x128xf32>
      %c0_15 = arith.constant 0 : index
      %c0_16 = arith.constant 0 : index
      %c0_17 = arith.constant 0 : index
      %34 = vector.load %arg5[%c0_15, %c0_16, %c0_17] : memref<1x8x128xf32, #tpu.memory_space<vmem>>, vector<1x8x128xf32>
      %35 = vector.shape_cast %34 : vector<1x8x128xf32> to vector<8x128xf32>
      %36 = vector.shape_cast %33 : vector<8x128xf32> to vector<1x8x128xf32>
      tpu.vector_store %arg5[%c0_15, %c0_16, %c0_17], %36 {strides = array<i32>} : memref<1x8x128xf32, #tpu.memory_space<vmem>>, vector<1x8x128xf32>,
      %c0_18 = arith.constant 0 : index
      %c0_19 = arith.constant 0 : index
      %c0_20 = arith.constant 0 : index
      %37 = vector.load %arg6[%c0_18, %c0_19, %c0_20] : memref<1x8x128xf32, #tpu.memory_space<vmem>>, vector<1x8x128xf32>
      %38 = vector.shape_cast %37 : vector<1x8x128xf32> to vector<8x128xf32>
      %39 = arith.addf %38, %30 : vector<8x128xf32>
      %c0_21 = arith.constant 0 : index
      %c0_22 = arith.constant 0 : index
      %c0_23 = arith.constant 0 : index
      %40 = vector.load %arg6[%c0_21, %c0_22, %c0_23] : memref<1x8x128xf32, #tpu.memory_space<vmem>>, vector<1x8x128xf32>
      %41 = vector.shape_cast %40 : vector<1x8x128xf32> to vector<8x128xf32>
      %42 = vector.shape_cast %39 : vector<8x128xf32> to vector<1x8x128xf32>
      tpu.vector_store %arg6[%c0_21, %c0_22, %c0_23], %42 {strides = array<i32>} : memref<1x8x128xf32, #tpu.memory_space<vmem>>, vector<1x8x128xf32>,
    } else {
    }
    %true = arith.constant true
    %11 = arith.xori %8, %true : i1
    %12 = arith.extui %11 : i1 to i32
    %c0_i32_4 = arith.constant 0 : i32
    %13 = arith.cmpi ne, %12, %c0_i32_4 : i32
    scf.if %13 {
      %c16_i32_5 = arith.constant 16 : i32
      %14 = arith.muli %4, %c16_i32_5 : i32
      %c0_i32_6 = arith.constant 0 : i32
      %c16_i32_7 = arith.constant 16 : i32
      %15 = arith.muli %c0_i32_6, %c16_i32_7 : i32
      %16 = tpu.assume_multiple %15, 16 : i32
      %17 = arith.index_cast %16 : i32 to index
      %c0 = arith.constant 0 : index
      %18 = vector.load %arg2[%17, %c0] : memref<16x128xf32, #tpu.memory_space<vmem>>, vector<16x128xf32>
      %19 = arith.index_cast %16 : i32 to index
      %c0_8 = arith.constant 0 : index
      %20 = vector.load %arg3[%19, %c0_8] : memref<16x128xf32, #tpu.memory_space<vmem>>, vector<16x128xf32>
      %21 = arith.index_cast %16 : i32 to index
      %c0_9 = arith.constant 0 : index
      %22 = vector.load %arg4[%21, %c0_9] : memref<16x128xf32, #tpu.memory_space<vmem>>, vector<16x128xf32>
      %c16_i32_10 = arith.constant 16 : i32
      %23 = arith.muli %c0_i32_6, %c16_i32_10 : i32
      %24 = arith.addi %14, %23 : i32
      %25 = tpu.iota {dimensions = array<i32: 0>} : vector<16x128xi32>
      %26 = vector.broadcast %24 : i32 to vector<16x128xi32>
      %27 = arith.addi %26, %25 : vector<16x128xi32>
      %c16_i32_11 = arith.constant 16 : i32
      %28 = vector.broadcast %c16_i32_11 : i32 to vector<16x128xi32>
      %29 = arith.cmpi slt, %27, %28 : vector<16x128xi32>
      %30 = arith.subf %18, %20 : vector<16x128xf32>
      %31 = arith.mulf %30, %30 : vector<16x128xf32>
      %32 = arith.mulf %31, %22 : vector<16x128xf32>
      %cst_12 = arith.constant 0.000000e+00 : f32
      %33 = vector.broadcast %cst_12 : f32 to vector<16x128xf32>
      %34 = arith.select %29, %32, %33 : vector<16x128xi1>, vector<16x128xf32>
      %cst_13 = arith.constant 0.000000e+00 : f32
      %35 = vector.broadcast %cst_13 : f32 to vector<16x128xf32>
      %36 = arith.select %29, %22, %35 : vector<16x128xi1>, vector<16x128xf32>
      %37 = vector.shape_cast %34 : vector<16x128xf32> to vector<2x8x128xf32>
      %cst_14 = arith.constant dense<0.000000e+00> : vector<8x128xf32>
      %38 = vector.multi_reduction <add>, %37, %cst_14 [0] : vector<2x8x128xf32> to vector<8x128xf32>
      %39 = arith.addf %5, %38 : vector<8x128xf32>
      %40 = vector.shape_cast %36 : vector<16x128xf32> to vector<2x8x128xf32>
      %cst_15 = arith.constant dense<0.000000e+00> : vector<8x128xf32>
      %41 = vector.multi_reduction <add>, %40, %cst_15 [0] : vector<2x8x128xf32> to vector<8x128xf32>
      %42 = arith.addf %5, %41 : vector<8x128xf32>
      %c1_i32_16 = arith.constant 1 : i32
      %c0_17 = arith.constant 0 : index
      %c0_18 = arith.constant 0 : index
      %c0_19 = arith.constant 0 : index
      %43 = vector.load %arg5[%c0_17, %c0_18, %c0_19] : memref<1x8x128xf32, #tpu.memory_space<vmem>>, vector<1x8x128xf32>
      %44 = vector.shape_cast %43 : vector<1x8x128xf32> to vector<8x128xf32>
      %45 = arith.addf %44, %39 : vector<8x128xf32>
      %c0_20 = arith.constant 0 : index
      %c0_21 = arith.constant 0 : index
      %c0_22 = arith.constant 0 : index
      %46 = vector.load %arg5[%c0_20, %c0_21, %c0_22] : memref<1x8x128xf32, #tpu.memory_space<vmem>>, vector<1x8x128xf32>
      %47 = vector.shape_cast %46 : vector<1x8x128xf32> to vector<8x128xf32>
      %48 = vector.shape_cast %45 : vector<8x128xf32> to vector<1x8x128xf32>
      tpu.vector_store %arg5[%c0_20, %c0_21, %c0_22], %48 {strides = array<i32>} : memref<1x8x128xf32, #tpu.memory_space<vmem>>, vector<1x8x128xf32>,
      %c0_23 = arith.constant 0 : index
      %c0_24 = arith.constant 0 : index
      %c0_25 = arith.constant 0 : index
      %49 = vector.load %arg6[%c0_23, %c0_24, %c0_25] : memref<1x8x128xf32, #tpu.memory_space<vmem>>, vector<1x8x128xf32>
      %50 = vector.shape_cast %49 : vector<1x8x128xf32> to vector<8x128xf32>
      %51 = arith.addf %50, %42 : vector<8x128xf32>
      %c0_26 = arith.constant 0 : index
      %c0_27 = arith.constant 0 : index
      %c0_28 = arith.constant 0 : index
      %52 = vector.load %arg6[%c0_26, %c0_27, %c0_28] : memref<1x8x128xf32, #tpu.memory_space<vmem>>, vector<1x8x128xf32>
      %53 = vector.shape_cast %52 : vector<1x8x128xf32> to vector<8x128xf32>
      %54 = vector.shape_cast %51 : vector<8x128xf32> to vector<1x8x128xf32>
      tpu.vector_store %arg6[%c0_26, %c0_27, %c0_28], %54 {strides = array<i32>} : memref<1x8x128xf32, #tpu.memory_space<vmem>>, vector<1x8x128xf32>,
    } else {
    }
    return
  }
  func.func @transform_0(%arg0: i32, %arg1: i32) -> (i32, i32) {
    %c1_i32 = arith.constant 1 : i32
    %0 = arith.muli %arg0, %c1_i32 : i32
    %1 = arith.addi %0, %arg1 : i32
    %c0_i32 = arith.constant 0 : i32
    %2 = arith.minsi %1, %c0_i32 : i32
    %c0_i32_0 = arith.constant 0 : i32
    %c0_i32_1 = arith.constant 0 : i32
    return %2, %c0_i32_0 : i32, i32
  }
  func.func @transform_1(%arg0: i32, %arg1: i32) -> (i32, i32) {
    %c1_i32 = arith.constant 1 : i32
    %0 = arith.muli %arg0, %c1_i32 : i32
    %1 = arith.addi %0, %arg1 : i32
    %c0_i32 = arith.constant 0 : i32
    %2 = arith.minsi %1, %c0_i32 : i32
    %c0_i32_0 = arith.constant 0 : i32
    %c0_i32_1 = arith.constant 0 : i32
    return %2, %c0_i32_0 : i32, i32
  }
  func.func @transform_2(%arg0: i32, %arg1: i32) -> (i32, i32) {
    %c1_i32 = arith.constant 1 : i32
    %0 = arith.muli %arg0, %c1_i32 : i32
    %1 = arith.addi %0, %arg1 : i32
    %c0_i32 = arith.constant 0 : i32
    %2 = arith.minsi %1, %c0_i32 : i32
    %c0_i32_0 = arith.constant 0 : i32
    %c0_i32_1 = arith.constant 0 : i32
    return %2, %c0_i32_0 : i32, i32
  }
  func.func @transform_3(%arg0: i32, %arg1: i32) -> (i32, i32, i32) {
    %c0_i32 = arith.constant 0 : i32
    %c0_i32_0 = arith.constant 0 : i32
    %c0_i32_1 = arith.constant 0 : i32
    return %arg0, %c0_i32, %c0_i32_0 : i32, i32, i32
  }
  func.func @transform_4(%arg0: i32, %arg1: i32) -> (i32, i32, i32) {
    %c0_i32 = arith.constant 0 : i32
    %c0_i32_0 = arith.constant 0 : i32
    %c0_i32_1 = arith.constant 0 : i32
    return %arg0, %c0_i32, %c0_i32_0 : i32, i32, i32
  }
}

</mosaic_0001>

<llo_original>
// kernel: masked_mse_loss.1
$region0: #{masked_mse_loss.1}
  #allocation0 [shape = 'u32[]', space=smem, size = 0x4, offset = 0x4, fixed_abs, tag = 'smem constant byte address 0x4 - core index']
  #allocation1 [shape = 'u32[144,128]{1,0:T(1,128)}', space=vmem, size = 0x12000, scoped, tag = 'internal scratch']
  %s0 = inlined_call_operand.vmem [shape: f32[16,128], index: 0, kind: input, shape index: {}]
  %s1 = inlined_call_operand.vmem [shape: f32[16,128], index: 1, kind: input, shape index: {}]
  %s2 = inlined_call_operand.vmem [shape: f32[16,128], index: 2, kind: input, shape index: {}]
  %s3 = inlined_call_operand.vmem [shape: f32[1,8,128], index: 3, kind: output, shape index: {0}]
  %s4 = inlined_call_operand.vmem [shape: f32[1,8,128], index: 4, kind: output, shape index: {1}]
  %5 = xla_tuple %s3, %s4
  %s6 = sld [smem:[#allocation0]]
  $region42: #{masked_mse_loss.1} parent=0
    _
  %s8 = ssub.s32 1, %s6
  %s9 = scalar_select 0, %s8, %s6
  // Predicated region
  $region2: #{masked_mse_loss.1} parent=0 // pred_check
    _
  $region3: #{masked_mse_loss.1} parent=0 // pred_check_branch
    %11 = sbr.rel (0) target = $region5
  $region4: #{masked_mse_loss.1} parent=0 // pred_region
    %s12 = sadd.s32 0, 0
    %p13 = scmp.lt.s32.totalorder %s12, 0
    %s14 = scalar_select %p13, %s12, 0
    %s15 = smul.u32 2, %s14
    %p16 = scmp.lt.s32.totalorder %s15, 1
    %s17 = scalar_select %p16, %s15, 1
    %s18 = smul.addr %s17, 8
    %s19 = scalar_lea.vmem %s0, %s18
    %s20 = sadd.s32 0, 0
    %p21 = scmp.lt.s32.totalorder %s20, 0
    %s22 = scalar_select %p21, %s20, 0
    %s23 = smul.u32 2, %s22
  $region5: #{masked_mse_loss.1} parent=0 // pred_fallthru
    _
  // Predicated region
  $region6: #{masked_mse_loss.1} parent=0 // pred_check
    _
  $region7: #{masked_mse_loss.1} parent=0 // pred_check_branch
    %25 = sbr.rel (0) target = $region9
  $region8: #{masked_mse_loss.1} parent=0 // pred_region
    %s26 = sadd.s32 0, 0
    %p27 = scmp.lt.s32.totalorder %s26, 0
    %s28 = scalar_select %p27, %s26, 0
    %s29 = smul.u32 2, %s28
    %p30 = scmp.lt.s32.totalorder %s29, 1
    %s31 = scalar_select %p30, %s29, 1
    %s32 = smul.addr %s31, 8
    %s33 = scalar_lea.vmem %s1, %s32
    %s34 = sadd.s32 0, 0
    %p35 = scmp.lt.s32.totalorder %s34, 0
    %s36 = scalar_select %p35, %s34, 0
    %s37 = smul.u32 2, %s36
  $region9: #{masked_mse_loss.1} parent=0 // pred_fallthru
    _
  // Predicated region
  $region10: #{masked_mse_loss.1} parent=0 // pred_check
    _
  $region11: #{masked_mse_loss.1} parent=0 // pred_check_branch
    %39 = sbr.rel (0) target = $region13
  $region12: #{masked_mse_loss.1} parent=0 // pred_region
    %s40 = sadd.s32 0, 0
    %p41 = scmp.lt.s32.totalorder %s40, 0
    %s42 = scalar_select %p41, %s40, 0
    %s43 = smul.u32 2, %s42
    %p44 = scmp.lt.s32.totalorder %s43, 1
    %s45 = scalar_select %p44, %s43, 1
    %s46 = smul.addr %s45, 8
    %s47 = scalar_lea.vmem %s2, %s46
    %s48 = sadd.s32 0, 0
    %p49 = scmp.lt.s32.totalorder %s48, 0
    %s50 = scalar_select %p49, %s48, 0
    %s51 = smul.u32 2, %s50
  $region13: #{masked_mse_loss.1} parent=0 // pred_fallthru
    _
  %s52 = sadd.s32 0, 0
  %p53 = scmp.lt.s32.totalorder %s52, 0
  %s54 = scalar_select %p53, %s52, 0
  %s55 = smul.u32 2, %s54
  %p56 = scmp.lt.s32.totalorder %s55, 1
  %s57 = scalar_select %p56, %s55, 1
  %s58 = smul.addr %s57, 8
  %s59 = scalar_lea.vmem %s0, %s58
  %s60 = sadd.s32 0, 0
  %p61 = scmp.lt.s32.totalorder %s60, 0
  %s62 = scalar_select %p61, %s60, 0
  %s63 = smul.u32 2, %s62
  %p64 = scmp.lt.s32.totalorder %s63, 1
  %s65 = scalar_select %p64, %s63, 1
  %s66 = smul.addr %s65, 8
  %s67 = scalar_lea.vmem %s1, %s66
  %s68 = sadd.s32 0, 0
  %p69 = scmp.lt.s32.totalorder %s68, 0
  %s70 = scalar_select %p69, %s68, 0
  %s71 = smul.u32 2, %s70
  %p72 = scmp.lt.s32.totalorder %s71, 1
  %s73 = scalar_select %p72, %s71, 1
  %s74 = smul.addr %s73, 8
  %s75 = scalar_lea.vmem %s2, %s74
  %s76 = sadd.s32 0, 0
  %p77 = scmp.lt.s32.totalorder %s76, 0
  %s78 = scalar_select %p77, %s76, 0
  %s79 = smul.u32 2, %s78
  %p80 = scmp.lt.s32.totalorder %s79, 1
  %s81 = scalar_select %p80, %s79, 1
  %s82 = smul.addr %s81, 8
  %s83 = scalar_lea.vmem %s0, %s82
  %s84 = sadd.s32 0, 0
  %p85 = scmp.lt.s32.totalorder %s84, 0
  %s86 = scalar_select %p85, %s84, 0
  %s87 = smul.u32 2, %s86
  %s88 = sadd.s32 0, 0
  %p89 = scmp.lt.s32.totalorder %s88, 0
  %s90 = scalar_select %p89, %s88, 0
  %s91 = smul.u32 2, %s90
  %p92 = scmp.lt.s32.totalorder %s91, 1
  %s93 = scalar_select %p92, %s91, 1
  %s94 = smul.addr %s93, 8
  %s95 = scalar_lea.vmem %s1, %s94
  %s96 = sadd.s32 0, 0
  %p97 = scmp.lt.s32.totalorder %s96, 0
  %s98 = scalar_select %p97, %s96, 0
  %s99 = smul.u32 2, %s98
  %s100 = sadd.s32 0, 0
  %p101 = scmp.lt.s32.totalorder %s100, 0
  %s102 = scalar_select %p101, %s100, 0
  %s103 = smul.u32 2, %s102
  %p104 = scmp.lt.s32.totalorder %s103, 1
  %s105 = scalar_select %p104, %s103, 1
  %s106 = smul.addr %s105, 8
  %s107 = scalar_lea.vmem %s2, %s106
  %s108 = sadd.s32 0, 0
  %p109 = scmp.lt.s32.totalorder %s108, 0
  %s110 = scalar_select %p109, %s108, 0
  %s111 = smul.u32 2, %s110
  %p112 = scmp.eq.s32.totalorder 0, 0
  // Predicated region
  $region14: #{masked_mse_loss.1} parent=0 // pred_check
    %p113 = pneg %p112
  $region15: #{masked_mse_loss.1} parent=0 // pred_check_branch
    %115 = sbr.rel (%p113) target = $region17
  $region16: #{masked_mse_loss.1} parent=0 // pred_region
    %116 = vst [vmem:[%s3] sm:$0xff] 0.0
    %117 = vst [vmem:[%s4] sm:$0xff] 0.0
  $region17: #{masked_mse_loss.1} parent=0 // pred_fallthru
    _
  %s118 = sadd.s32 0, 0
  %s119 = sadd.s32 %s118, 1
  %s120 = smul.u32 %s119, 16
  %p121 = scmp.le.s32.totalorder %s120, 16
  // Predicated region
  $region18: #{masked_mse_loss.1} parent=0 // pred_check
    %p122 = pneg %p121
  $region19: #{masked_mse_loss.1} parent=0 // pred_check_branch
    %124 = sbr.rel (%p122) target = $region21
  $region20: #{masked_mse_loss.1} parent=0 // pred_region
    %v125 = vld [vmem:[%s83] sm:$0xff]
    %v126 = vld [vmem:[%s83 + $0x8] sm:$0xff]
    %v127 = vld [vmem:[%s95] sm:$0xff]
    %v128 = vld [vmem:[%s95 + $0x8] sm:$0xff]
    %v129 = vld [vmem:[%s107] sm:$0xff]
    %v130 = vld [vmem:[%s107 + $0x8] sm:$0xff]
    %v131 = vsub.f32 %v125, %v127
    %v132 = vsub.f32 %v126, %v128
    %v133 = vmul.f32 %v131, %v131
    %v134 = vmul.f32 %v132, %v132
    %v135 = vmul.f32 %v133, %v129
    %v136 = vmul.f32 %v134, %v130
    %v137 = vadd.f32 %v135, %v136
    %v138 = vadd.f32 %v137, 0.0
    %v139 = vadd.f32 %v129, %v130
    %v140 = vadd.f32 %v139, 0.0
    %v141 = vld [vmem:[%s3] sm:$0xff]
    %v142 = vadd.f32 %v141, %v138
    %143 = vst [vmem:[%s3] sm:$0xff] %v142
    %v144 = vld [vmem:[%s4] sm:$0xff]
    %v145 = vadd.f32 %v144, %v140
    %146 = vst [vmem:[%s4] sm:$0xff] %v145
  $region21: #{masked_mse_loss.1} parent=0 // pred_fallthru
    _
  %p147 = scmp.gt.s32.totalorder %s120, 16
  // Predicated region
  $region22: #{masked_mse_loss.1} parent=0 // pred_check
    %p148 = pneg %p147
  $region23: #{masked_mse_loss.1} parent=0 // pred_check_branch
    %150 = sbr.rel (%p148) target = $region25
  $region24: #{masked_mse_loss.1} parent=0 // pred_region
    %s151 = smul.u32 %s118, 16
    %v152 = vld [vmem:[%s83] sm:$0xff]
    %v153 = vld [vmem:[%s83 + $0x8] sm:$0xff]
    %v154 = vld [vmem:[%s95] sm:$0xff]
    %v155 = vld [vmem:[%s95 + $0x8] sm:$0xff]
    %v156 = vld [vmem:[%s107] sm:$0xff]
    %v157 = vld [vmem:[%s107 + $0x8] sm:$0xff]
    %v158 = vlaneseq
    %v159 = vshrl.u32 %v158, 7
    %v160 = vadd.s32 %v159, 8
    %v161 = vstv %s151
    %v162 = vadd.s32 %v161, %v159
    %v163 = vadd.s32 %v161, %v160
    %vm164 = vcmp.lt.s32.totalorder %v162, 16
    %vm165 = vcmp.lt.s32.totalorder %v163, 16
    %v166 = vsub.f32 %v152, %v154
    %v167 = vsub.f32 %v153, %v155
    %v168 = vmul.f32 %v166, %v166
    %v169 = vmul.f32 %v167, %v167
    %v170 = vmul.f32 %v168, %v156
    %v171 = vmul.f32 %v169, %v157
    %v172 = vsel %vm164, %v170, 0.0
    %v173 = vsel %vm165, %v171, 0.0
    %v174 = vsel %vm164, %v156, 0.0
    %v175 = vsel %vm165, %v157, 0.0
    %v176 = vadd.f32 %v172, %v173
    %v177 = vadd.f32 %v176, 0.0
    %v178 = vadd.f32 %v174, %v175
    %v179 = vadd.f32 %v178, 0.0
    %v180 = vld [vmem:[%s3] sm:$0xff]
    %v181 = vadd.f32 %v180, %v177
    %182 = vst [vmem:[%s3] sm:$0xff] %v181
    %v183 = vld [vmem:[%s4] sm:$0xff]
    %v184 = vadd.f32 %v183, %v179
    %185 = vst [vmem:[%s4] sm:$0xff] %v184
  $region25: #{masked_mse_loss.1} parent=0 // pred_fallthru
    _
  // Predicated region
  $region26: #{masked_mse_loss.1} parent=0 // pred_check
    _
  $region27: #{masked_mse_loss.1} parent=0 // pred_check_branch
    %187 = sbr.rel (0) target = $region29
  $region28: #{masked_mse_loss.1} parent=0 // pred_region
    _
  $region29: #{masked_mse_loss.1} parent=0 // pred_fallthru
    _
  // Predicated region
  $region30: #{masked_mse_loss.1} parent=0 // pred_check
    _
  $region31: #{masked_mse_loss.1} parent=0 // pred_check_branch
    %189 = sbr.rel (0) target = $region33
  $region32: #{masked_mse_loss.1} parent=0 // pred_region
    _
  $region33: #{masked_mse_loss.1} parent=0 // pred_fallthru
    _
  // Predicated region
  $region34: #{masked_mse_loss.1} parent=0 // pred_check
    _
  $region35: #{masked_mse_loss.1} parent=0 // pred_check_branch
    %191 = sbr.rel (0) target = $region37
  $region36: #{masked_mse_loss.1} parent=0 // pred_region
    _
  $region37: #{masked_mse_loss.1} parent=0 // pred_fallthru
    _
  // Predicated region
  $region38: #{masked_mse_loss.1} parent=0 // pred_check
    _
  $region39: #{masked_mse_loss.1} parent=0 // pred_check_branch
    %193 = sbr.rel (0) target = $region41
  $region40: #{masked_mse_loss.1} parent=0 // pred_region
    _
  $region41: #{masked_mse_loss.1} parent=0 // pred_fallthru
    _

</llo_original>
